<compile_context>
chip_gen: v5e
topology: v5e:2x2
jax: 0.10.0
libtpu: 0.0.40
codegen_flags: <defaults>
</compile_context>

<pallas_src>
import functools

import numpy as np
import jax
import jax.numpy as jnp
from jax import lax
from jax.experimental import pallas as pl
from jax.experimental.pallas import tpu as pltpu


# ----------------------------------------------------------------------------
# Kernel
# ----------------------------------------------------------------------------
def _rca_kernel(x_ref, wb1_ref, b1_ref, wb2_ref, b2_ref,
                wa1_ref, ba1_ref, wa2_ref, ba2_ref, sel_ref,
                out_ref, pad_ref, *, Bt, H, W, C, mm_dtype):
    WC = W * C
    M = Bt * H

    x = x_ref[...]                                        # (Bt, H, WC) f32

    # Top/bottom 1-row halo of the lane-dense staging scratch.  Two full-width
    # (unmasked) row stores of a few KiB; the kw halo is folded into the banded
    # weights so there are no lane-halo (masked column) stores at all.
    zrow = jnp.zeros((Bt, 1, WC), mm_dtype)
    pad_ref[:, 0:1, :] = zrow
    pad_ref[:, H + 1:H + 2, :] = zrow

    def conv3x3(wb_ref, b_ref):
        # Row-window conv: three contiguous full-lane-width row-window loads
        # (sublane offset kh) feeding three MXU matmuls with K = N = W*C
        # against host-built block-banded weights.  No im2col scratch, no
        # per-tap C-wide copies; f32 accumulation.
        acc = jnp.dot(pad_ref[:, 0:H, :].reshape(M, WC), wb_ref[0],
                      preferred_element_type=jnp.float32)
        acc += jnp.dot(pad_ref[:, 1:H + 1, :].reshape(M, WC), wb_ref[1],
                       preferred_element_type=jnp.float32)
        acc += jnp.dot(pad_ref[:, 2:H + 2, :].reshape(M, WC), wb_ref[2],
                       preferred_element_type=jnp.float32)
        return acc + b_ref[...]                           # (M, WC) f32

    # conv1 -> ReLU -> restage -> conv2 (activations cast to mm_dtype for MXU).
    pad_ref[:, 1:H + 1, :] = x.astype(mm_dtype)
    t1 = jnp.maximum(conv3x3(wb1_ref, b1_ref), 0.0)
    pad_ref[:, 1:H + 1, :] = t1.reshape(Bt, H, WC).astype(mm_dtype)
    x2 = conv3x3(wb2_ref, b2_ref).reshape(Bt, H, WC)      # f32, lane-dense SSA

    # Channel attention, computed from the SSA value (no VMEM re-read of x2):
    # sublane-reduce over H while lane-dense, then a tiny (W*C, C) selection
    # matmul (1/(H*W) folded in) does the W-group reduce on the MXU.
    rowsum = jnp.sum(x2, axis=1)                                         # (Bt, WC)
    z = jnp.dot(rowsum, sel_ref[...], preferred_element_type=jnp.float32)  # (Bt, C)
    h1 = jnp.maximum(
        jnp.dot(z, wa1_ref[...], preferred_element_type=jnp.float32) + ba1_ref[...],
        0.0)                                                             # (Bt, C//r)
    sc = jax.nn.sigmoid(
        jnp.dot(h1, wa2_ref[...], preferred_element_type=jnp.float32) + ba2_ref[...])
    sc_ld = jnp.broadcast_to(sc[:, None, :], (Bt, W, C)).reshape(Bt, 1, WC)

    # out = x2 * scale + residual, lane-dense (W*C-wide) unmasked writeback.
    out_ref[...] = (x2 * sc_ld + x).astype(out_ref.dtype)


# ----------------------------------------------------------------------------
# Host-side helpers
# ----------------------------------------------------------------------------
def _tpu_vmem_and_cores():
    """Best-effort generation query: (physical VMEM bytes, TensorCores/chip)."""
    vmem = 64 << 20            # conservative default (v7x-sized)
    cores = 1
    try:
        info = pltpu.get_tpu_info()
        vmem = int(getattr(info, "vmem_capacity_bytes", vmem))
        for name in ("num_tensorcores", "tensorcore_count", "num_cores",
                     "core_count"):
            v = getattr(info, name, None)
            if v:
                cores = int(v)
                break
    except Exception:
        pass
    if cores == 1:
        try:
            kind = jax.devices()[0].device_kind.lower()
            if any(t in kind for t in ("v4", "v5p", "v7", "7x")):   # dual-TC parts
                cores = 2
        except Exception:
            pass
    return vmem, cores


def _footprint_bytes(Bt, H, W, C, mm_bytes):
    """Conservative VMEM footprint for one grid step (lane-dense layout, so
    logical bytes ~= physical bytes)."""
    WC = W * C
    img_f32 = Bt * H * WC * 4
    io_blocks = 2 * 2 * img_f32                         # x & out, double-buffered
    pad = Bt * (H + 2) * WC * mm_bytes                  # staging scratch
    conv_work = 3 * img_f32 + 2 * Bt * H * WC * mm_bytes  # SSA temps / casts
    band_w = 2 * 2 * 3 * WC * WC * mm_bytes             # wb1+wb2, double-buffered
    small = 8 * WC * 4 + 4 * WC * C * 4 + (256 << 10)   # biases, attn, sel, slack
    return io_blocks + pad + conv_work + band_w + small


def _pick_batch_tile(B, H, W, C, mm_bytes, budget, cores, max_bt):
    cap = min(max_bt, B)
    if cores > 1 and B > 1:
        # Keep at least `cores` grid steps so every TensorCore gets work
        # (v7x); on single-TC v5e/v6e grow Bt as far as VMEM allows.
        cap = min(cap, max(1, B // cores))
    best = 1
    for bt in range(1, cap + 1):
        if B % bt == 0 and _footprint_bytes(bt, H, W, C, mm_bytes) <= budget:
            best = bt
    return best


def _band_weight(w_hwio, W, C, dtype):
    """Fold the three kw taps of a 3x3 HWIO conv weight into a block-
    tridiagonal matrix per kh:
        wb[kh, p_in*C + ci, w*C + co] = w[kh, p_in - w + 1, ci, co]
    so conv row h = sum_kh  padded_row(h+kh) @ wb[kh]."""
    w_np = np.asarray(w_hwio, np.float32)               # (3, 3, C, C)
    WC = W * C
    wb = np.zeros((3, WC, WC), np.float32)
    for kh in range(3):
        for kw in range(3):
            for wo in range(W):
                pi = wo + kw - 1
                if 0 <= pi < W:
                    wb[kh, pi * C:(pi + 1) * C, wo * C:(wo + 1) * C] = w_np[kh, kw]
    return jnp.asarray(wb, dtype)


def rca_block(x, params, *, mm_dtype=jnp.bfloat16, max_block_b=32):
    """x: (B, H, W, C) float32, NHWC.

    mm_dtype: conv-matmul input dtype.  bfloat16 is the native MXU fast path on
    every targeted generation (v5e/v6e/v7x); accumulation and all attention /
    scale math stay float32.  Note the activations (x and relu(conv1)) are cast
    to mm_dtype for the convs; pass float32 for tight comparisons against an
    f32 PyTorch/JAX reference.
    """
    B, H, W, C = x.shape
    Cr = params["wa1"].shape[1]
    WC = W * C
    mm_np = np.dtype(mm_dtype)

    vmem_phys, cores = _tpu_vmem_and_cores()
    budget = max(32 << 20, int(vmem_phys * 0.75))
    Bt = _pick_batch_tile(B, H, W, C, mm_np.itemsize, budget, cores, max_block_b)
    fp = _footprint_bytes(Bt, H, W, C, mm_np.itemsize)
    vmem_limit = int(min(budget, max(32 << 20, 2 * fp)))

    # Lane-dense HBM views: kernel-facing blocks get a W*C-wide lane axis.
    x_ld = x.reshape(B, H, WC)

    # Host-side weight prep: block-banded conv weights, W-tiled biases (so they
    # broadcast directly onto the (M, W*C) matmul output) and the GAP selection
    # matrix with 1/(H*W) folded in.
    wb1 = _band_weight(params["w1"], W, C, mm_dtype)
    wb2 = _band_weight(params["w2"], W, C, mm_dtype)
    b1_ld = jnp.tile(params["b1"].astype(jnp.float32), (1, W))          # (1, W*C)
    b2_ld = jnp.tile(params["b2"].astype(jnp.float32), (1, W))
    sel = jnp.asarray(np.tile(np.eye(C, dtype=np.float32), (W, 1)) / (H * W))

    kernel = functools.partial(_rca_kernel, Bt=Bt, H=H, W=W, C=C, mm_dtype=mm_np)

    def cspec(shape):
        return pl.BlockSpec(shape, lambda *_: (0,) * len(shape))

    # TODO(synk): for very large W*C the banded weight grows as (W*C)^2 and the
    # per-image block grows past VMEM; add a second "arbitrary" grid axis over
    # H row-strips (1-row halo) and tile the band over W, and single-buffer the
    # constant weight blocks (pipeline_mode=pl.Buffered(1)).  Not needed at
    # these sizes since the 9x im2col scratch that drove the old footprint is
    # gone.
    out_ld = pl.pallas_call(
        kernel,
        out_shape=jax.ShapeDtypeStruct((B, H, WC), jnp.float32),
        grid=(B // Bt,),
        in_specs=[
            pl.BlockSpec((Bt, H, WC), lambda b: (b, 0, 0)),   # x (lane-dense)
            cspec((3, WC, WC)),     # banded conv1 weight
            cspec((1, WC)),         # conv1 bias (W-tiled)
            cspec((3, WC, WC)),     # banded conv2 weight
            cspec((1, WC)),         # conv2 bias (W-tiled)
            cspec((C, Cr)),         # attention 1x1 down
            cspec((1, Cr)),         # attention bias 1
            cspec((Cr, C)),         # attention 1x1 up
            cspec((1, C)),          # attention bias 2
            cspec((WC, C)),         # GAP selection matrix (includes 1/(H*W))
        ],
        out_specs=pl.BlockSpec((Bt, H, WC), lambda b: (b, 0, 0)),
        scratch_shapes=[
            pltpu.VMEM((Bt, H + 2, WC), mm_np),   # lane-dense padded staging
        ],
        compiler_params=pltpu.CompilerParams(
            dimension_semantics=("parallel",),
            vmem_limit_bytes=vmem_limit),
    )(x_ld, wb1, b1_ld, wb2, b2_ld,
      params["wa1"], params["ba1"], params["wa2"], params["ba2"], sel)
    return out_ld.reshape(B, H, W, C)


# ----------------------------------------------------------------------------
# Pure-JAX reference + params
# ----------------------------------------------------------------------------
def rca_block_ref(x, p):
    """Pure-JAX reference (NHWC) matching the PyTorch RCABlock forward."""
    dn = ("NHWC", "HWIO", "NHWC")
    t1 = lax.conv_general_dilated(x, p["w1"], (1, 1), "SAME",
                                  dimension_numbers=dn) + p["b1"].reshape(1, 1, 1, -1)
    t1 = jnp.maximum(t1, 0.0)
    x2 = lax.conv_general_dilated(t1, p["w2"], (1, 1), "SAME",
                                  dimension_numbers=dn) + p["b2"].reshape(1, 1, 1, -1)
    z = jnp.mean(x2, axis=(1, 2), keepdims=True)                  # (B,1,1,C)
    h1 = jnp.maximum(jnp.einsum("bijc,cd->bijd", z, p["wa1"])
                     + p["ba1"].reshape(1, 1, 1, -1), 0.0)
    sc = jax.nn.sigmoid(jnp.einsum("bijd,dc->bijc", h1, p["wa2"])
                        + p["ba2"].reshape(1, 1, 1, -1))
    return x2 * sc + x


def init_params(key, channel, r):
    ks = jax.random.split(key, 8)
    cr = channel // r
    s = 0.1
    return {
        "w1": s * jax.random.normal(ks[0], (3, 3, channel, channel), jnp.float32),
        "b1": s * jax.random.normal(ks[1], (1, channel), jnp.float32),
        "w2": s * jax.random.normal(ks[2], (3, 3, channel, channel), jnp.float32),
        "b2": s * jax.random.normal(ks[3], (1, channel), jnp.float32),
        "wa1": s * jax.random.normal(ks[4], (channel, cr), jnp.float32),
        "ba1": s * jax.random.normal(ks[5], (1, cr), jnp.float32),
        "wa2": s * jax.random.normal(ks[6], (cr, channel), jnp.float32),
        "ba2": s * jax.random.normal(ks[7], (1, channel), jnp.float32),
    }


if __name__ == "__main__":
    B, C, H, W, r = 2, 8, 16, 16, 2
    key = jax.random.PRNGKey(0)
    kx, kp = jax.random.split(key)
    x = jax.random.normal(kx, (B, H, W, C), jnp.float32)   # NHWC
    params = init_params(kp, C, r)

    ref = rca_block_ref(x, params)

    # f32 matmul path: tight check of the kernel structure.
    out_f32 = jax.block_until_ready(rca_block(x, params, mm_dtype=jnp.float32))
    assert out_f32.shape == (B, H, W, C)
    assert jnp.allclose(out_f32, ref, rtol=5e-4, atol=5e-4), "f32 path mismatch"

    # bf16 matmul path: production fast path for the MXU (f32 accumulate).
    out_bf16 = jax.block_until_ready(rca_block(x, params, mm_dtype=jnp.bfloat16))
    assert jnp.allclose(out_bf16, ref, rtol=2e-2, atol=2e-2), "bf16 path mismatch"

    print("KERNEL_OK")
</pallas_src>

<mosaic_0001>
module attributes {stable_mosaic.version = 11 : i64} {
  func.func @_rca_kernel(%arg0: i32, %arg1: memref<2x16x128xf32, #tpu.memory_space<vmem>>, %arg2: memref<3x128x128xf32, #tpu.memory_space<vmem>>, %arg3: memref<1x128xf32, #tpu.memory_space<vmem>>, %arg4: memref<3x128x128xf32, #tpu.memory_space<vmem>>, %arg5: memref<1x128xf32, #tpu.memory_space<vmem>>, %arg6: memref<8x4xf32, #tpu.memory_space<vmem>>, %arg7: memref<1x4xf32, #tpu.memory_space<vmem>>, %arg8: memref<4x8xf32, #tpu.memory_space<vmem>>, %arg9: memref<1x8xf32, #tpu.memory_space<vmem>>, %arg10: memref<128x8xf32, #tpu.memory_space<vmem>>, %arg11: memref<2x16x128xf32, #tpu.memory_space<vmem>>, %arg12: memref<2x18x128xf32, #tpu.memory_space<vmem>>) attributes {dimension_semantics = [#tpu.dimension_semantics<parallel>], iteration_bounds = array<i64: 1>, scalar_prefetch = 0 : i64, scratch_operands = 1 : i64, tpu.core_type = #tpu.core_type<tc>, window_params = [{transform_indices = @transform_0, window_bounds = array<i64: 2, 16, 128>}, {pipeline_mode = #tpu.pipeline_mode<synchronous>, transform_indices = @transform_1, window_bounds = array<i64: 3, 128, 128>}, {pipeline_mode = #tpu.pipeline_mode<synchronous>, transform_indices = @transform_2, window_bounds = array<i64: 1, 128>}, {pipeline_mode = #tpu.pipeline_mode<synchronous>, transform_indices = @transform_3, window_bounds = array<i64: 3, 128, 128>}, {pipeline_mode = #tpu.pipeline_mode<synchronous>, transform_indices = @transform_4, window_bounds = array<i64: 1, 128>}, {pipeline_mode = #tpu.pipeline_mode<synchronous>, transform_indices = @transform_5, window_bounds = array<i64: 8, 4>}, {pipeline_mode = #tpu.pipeline_mode<synchronous>, transform_indices = @transform_6, window_bounds = array<i64: 1, 4>}, {pipeline_mode = #tpu.pipeline_mode<synchronous>, transform_indices = @transform_7, window_bounds = array<i64: 4, 8>}, {pipeline_mode = #tpu.pipeline_mode<synchronous>, transform_indices = @transform_8, window_bounds = array<i64: 1, 8>}, {pipeline_mode = #tpu.pipeline_mode<synchronous>, transform_indices = @transform_9, window_bounds = array<i64: 128, 8>}, {transform_indices = @transform_10, window_bounds = array<i64: 2, 16, 128>}]} {
    %c0 = arith.constant 0 : index
    %c0_0 = arith.constant 0 : index
    %c0_1 = arith.constant 0 : index
    %0 = vector.load %arg1[%c0, %c0_0, %c0_1] : memref<2x16x128xf32, #tpu.memory_space<vmem>>, vector<2x16x128xf32>
    %cst = arith.constant 0.000000e+00 : f32
    %1 = vector.broadcast %cst : f32 to vector<2x1x128xf32>
    %c0_2 = arith.constant 0 : index
    %c0_3 = arith.constant 0 : index
    %c0_4 = arith.constant 0 : index
    %2 = vector.load %arg12[%c0_2, %c0_3, %c0_4] : memref<2x18x128xf32, #tpu.memory_space<vmem>>, vector<2x1x128xf32>
    tpu.vector_store %arg12[%c0_2, %c0_3, %c0_4], %1 {strides = array<i32>} : memref<2x18x128xf32, #tpu.memory_space<vmem>>, vector<2x1x128xf32>,
    %c0_5 = arith.constant 0 : index
    %c17 = arith.constant 17 : index
    %c0_6 = arith.constant 0 : index
    %3 = vector.load %arg12[%c0_5, %c17, %c0_6] : memref<2x18x128xf32, #tpu.memory_space<vmem>>, vector<2x1x128xf32>
    tpu.vector_store %arg12[%c0_5, %c17, %c0_6], %1 {strides = array<i32>} : memref<2x18x128xf32, #tpu.memory_space<vmem>>, vector<2x1x128xf32>,
    %c0_7 = arith.constant 0 : index
    %c1 = arith.constant 1 : index
    %c0_8 = arith.constant 0 : index
    %4 = vector.load %arg12[%c0_7, %c1, %c0_8] : memref<2x18x128xf32, #tpu.memory_space<vmem>>, vector<2x16x128xf32>
    tpu.vector_store %arg12[%c0_7, %c1, %c0_8], %0 {strides = array<i32>} : memref<2x18x128xf32, #tpu.memory_space<vmem>>, vector<2x16x128xf32>,
    %c0_9 = arith.constant 0 : index
    %c0_10 = arith.constant 0 : index
    %c0_11 = arith.constant 0 : index
    %5 = vector.load %arg12[%c0_9, %c0_10, %c0_11] : memref<2x18x128xf32, #tpu.memory_space<vmem>>, vector<2x16x128xf32>
    %6 = vector.shape_cast %5 : vector<2x16x128xf32> to vector<32x128xf32>
    %c0_12 = arith.constant 0 : index
    %c0_13 = arith.constant 0 : index
    %c0_14 = arith.constant 0 : index
    %7 = vector.load %arg2[%c0_12, %c0_13, %c0_14] : memref<3x128x128xf32, #tpu.memory_space<vmem>>, vector<1x128x128xf32>
    %8 = vector.shape_cast %7 : vector<1x128x128xf32> to vector<128x128xf32>
    %cst_15 = arith.constant dense<0.000000e+00> : vector<32x128xf32>
    %9 = tpu.matmul %6, %8, %cst_15 {dimension_numbers = #tpu.dot_dimension_numbers<[1], [0], [0], [1], [0, 0, 1, 1], [], []>} : vector<32x128xf32>, vector<128x128xf32>, vector<32x128xf32> -> vector<32x128xf32>
    %c0_16 = arith.constant 0 : index
    %c1_17 = arith.constant 1 : index
    %c0_18 = arith.constant 0 : index
    %10 = vector.load %arg12[%c0_16, %c1_17, %c0_18] : memref<2x18x128xf32, #tpu.memory_space<vmem>>, vector<2x16x128xf32>
    %11 = vector.shape_cast %10 : vector<2x16x128xf32> to vector<32x128xf32>
    %c1_19 = arith.constant 1 : index
    %c0_20 = arith.constant 0 : index
    %c0_21 = arith.constant 0 : index
    %12 = vector.load %arg2[%c1_19, %c0_20, %c0_21] : memref<3x128x128xf32, #tpu.memory_space<vmem>>, vector<1x128x128xf32>
    %13 = vector.shape_cast %12 : vector<1x128x128xf32> to vector<128x128xf32>
    %cst_22 = arith.constant dense<0.000000e+00> : vector<32x128xf32>
    %14 = tpu.matmul %11, %13, %cst_22 {dimension_numbers = #tpu.dot_dimension_numbers<[1], [0], [0], [1], [0, 0, 1, 1], [], []>} : vector<32x128xf32>, vector<128x128xf32>, vector<32x128xf32> -> vector<32x128xf32>
    %15 = arith.addf %9, %14 : vector<32x128xf32>
    %c0_23 = arith.constant 0 : index
    %c2 = arith.constant 2 : index
    %c0_24 = arith.constant 0 : index
    %16 = vector.load %arg12[%c0_23, %c2, %c0_24] : memref<2x18x128xf32, #tpu.memory_space<vmem>>, vector<2x16x128xf32>
    %17 = vector.shape_cast %16 : vector<2x16x128xf32> to vector<32x128xf32>
    %c2_25 = arith.constant 2 : index
    %c0_26 = arith.constant 0 : index
    %c0_27 = arith.constant 0 : index
    %18 = vector.load %arg2[%c2_25, %c0_26, %c0_27] : memref<3x128x128xf32, #tpu.memory_space<vmem>>, vector<1x128x128xf32>
    %19 = vector.shape_cast %18 : vector<1x128x128xf32> to vector<128x128xf32>
    %cst_28 = arith.constant dense<0.000000e+00> : vector<32x128xf32>
    %20 = tpu.matmul %17, %19, %cst_28 {dimension_numbers = #tpu.dot_dimension_numbers<[1], [0], [0], [1], [0, 0, 1, 1], [], []>} : vector<32x128xf32>, vector<128x128xf32>, vector<32x128xf32> -> vector<32x128xf32>
    %21 = arith.addf %15, %20 : vector<32x128xf32>
    %c0_29 = arith.constant 0 : index
    %c0_30 = arith.constant 0 : index
    %22 = vector.load %arg3[%c0_29, %c0_30] : memref<1x128xf32, #tpu.memory_space<vmem>>, vector<1x128xf32>
    %23 = vector.broadcast %22 : vector<1x128xf32> to vector<32x128xf32>
    %24 = arith.addf %21, %23 : vector<32x128xf32>
    %cst_31 = arith.constant 0.000000e+00 : f32
    %25 = vector.broadcast %cst_31 : f32 to vector<32x128xf32>
    %26 = arith.maximumf %24, %25 : vector<32x128xf32>
    %27 = vector.shape_cast %26 : vector<32x128xf32> to vector<2x16x128xf32>
    %c0_32 = arith.constant 0 : index
    %c1_33 = arith.constant 1 : index
    %c0_34 = arith.constant 0 : index
    %28 = vector.load %arg12[%c0_32, %c1_33, %c0_34] : memref<2x18x128xf32, #tpu.memory_space<vmem>>, vector<2x16x128xf32>
    tpu.vector_store %arg12[%c0_32, %c1_33, %c0_34], %27 {strides = array<i32>} : memref<2x18x128xf32, #tpu.memory_space<vmem>>, vector<2x16x128xf32>,
    %c0_35 = arith.constant 0 : index
    %c0_36 = arith.constant 0 : index
    %c0_37 = arith.constant 0 : index
    %29 = vector.load %arg12[%c0_35, %c0_36, %c0_37] : memref<2x18x128xf32, #tpu.memory_space<vmem>>, vector<2x16x128xf32>
    %30 = vector.shape_cast %29 : vector<2x16x128xf32> to vector<32x128xf32>
    %c0_38 = arith.constant 0 : index
    %c0_39 = arith.constant 0 : index
    %c0_40 = arith.constant 0 : index
    %31 = vector.load %arg4[%c0_38, %c0_39, %c0_40] : memref<3x128x128xf32, #tpu.memory_space<vmem>>, vector<1x128x128xf32>
    %32 = vector.shape_cast %31 : vector<1x128x128xf32> to vector<128x128xf32>
    %cst_41 = arith.constant dense<0.000000e+00> : vector<32x128xf32>
    %33 = tpu.matmul %30, %32, %cst_41 {dimension_numbers = #tpu.dot_dimension_numbers<[1], [0], [0], [1], [0, 0, 1, 1], [], []>} : vector<32x128xf32>, vector<128x128xf32>, vector<32x128xf32> -> vector<32x128xf32>
    %c0_42 = arith.constant 0 : index
    %c1_43 = arith.constant 1 : index
    %c0_44 = arith.constant 0 : index
    %34 = vector.load %arg12[%c0_42, %c1_43, %c0_44] : memref<2x18x128xf32, #tpu.memory_space<vmem>>, vector<2x16x128xf32>
    %35 = vector.shape_cast %34 : vector<2x16x128xf32> to vector<32x128xf32>
    %c1_45 = arith.constant 1 : index
    %c0_46 = arith.constant 0 : index
    %c0_47 = arith.constant 0 : index
    %36 = vector.load %arg4[%c1_45, %c0_46, %c0_47] : memref<3x128x128xf32, #tpu.memory_space<vmem>>, vector<1x128x128xf32>
    %37 = vector.shape_cast %36 : vector<1x128x128xf32> to vector<128x128xf32>
    %cst_48 = arith.constant dense<0.000000e+00> : vector<32x128xf32>
    %38 = tpu.matmul %35, %37, %cst_48 {dimension_numbers = #tpu.dot_dimension_numbers<[1], [0], [0], [1], [0, 0, 1, 1], [], []>} : vector<32x128xf32>, vector<128x128xf32>, vector<32x128xf32> -> vector<32x128xf32>
    %39 = arith.addf %33, %38 : vector<32x128xf32>
    %c0_49 = arith.constant 0 : index
    %c2_50 = arith.constant 2 : index
    %c0_51 = arith.constant 0 : index
    %40 = vector.load %arg12[%c0_49, %c2_50, %c0_51] : memref<2x18x128xf32, #tpu.memory_space<vmem>>, vector<2x16x128xf32>
    %41 = vector.shape_cast %40 : vector<2x16x128xf32> to vector<32x128xf32>
    %c2_52 = arith.constant 2 : index
    %c0_53 = arith.constant 0 : index
    %c0_54 = arith.constant 0 : index
    %42 = vector.load %arg4[%c2_52, %c0_53, %c0_54] : memref<3x128x128xf32, #tpu.memory_space<vmem>>, vector<1x128x128xf32>
    %43 = vector.shape_cast %42 : vector<1x128x128xf32> to vector<128x128xf32>
    %cst_55 = arith.constant dense<0.000000e+00> : vector<32x128xf32>
    %44 = tpu.matmul %41, %43, %cst_55 {dimension_numbers = #tpu.dot_dimension_numbers<[1], [0], [0], [1], [0, 0, 1, 1], [], []>} : vector<32x128xf32>, vector<128x128xf32>, vector<32x128xf32> -> vector<32x128xf32>
    %45 = arith.addf %39, %44 : vector<32x128xf32>
    %c0_56 = arith.constant 0 : index
    %c0_57 = arith.constant 0 : index
    %46 = vector.load %arg5[%c0_56, %c0_57] : memref<1x128xf32, #tpu.memory_space<vmem>>, vector<1x128xf32>
    %47 = vector.broadcast %46 : vector<1x128xf32> to vector<32x128xf32>
    %48 = arith.addf %45, %47 : vector<32x128xf32>
    %49 = vector.shape_cast %48 : vector<32x128xf32> to vector<2x16x128xf32>
    %cst_58 = arith.constant dense<0.000000e+00> : vector<2x128xf32>
    %50 = vector.multi_reduction <add>, %49, %cst_58 [1] : vector<2x16x128xf32> to vector<2x128xf32>
    %c0_59 = arith.constant 0 : index
    %c0_60 = arith.constant 0 : index
    %51 = vector.load %arg10[%c0_59, %c0_60] : memref<128x8xf32, #tpu.memory_space<vmem>>, vector<128x8xf32>
    %cst_61 = arith.constant dense<0.000000e+00> : vector<2x8xf32>
    %52 = tpu.matmul %50, %51, %cst_61 {dimension_numbers = #tpu.dot_dimension_numbers<[1], [0], [0], [1], [0, 0, 1, 1], [], []>} : vector<2x128xf32>, vector<128x8xf32>, vector<2x8xf32> -> vector<2x8xf32>
    %c0_62 = arith.constant 0 : index
    %c0_63 = arith.constant 0 : index
    %53 = vector.load %arg6[%c0_62, %c0_63] : memref<8x4xf32, #tpu.memory_space<vmem>>, vector<8x4xf32>
    %cst_64 = arith.constant dense<0.000000e+00> : vector<2x4xf32>
    %54 = tpu.matmul %52, %53, %cst_64 {dimension_numbers = #tpu.dot_dimension_numbers<[1], [0], [0], [1], [0, 0, 1, 1], [], []>} : vector<2x8xf32>, vector<8x4xf32>, vector<2x4xf32> -> vector<2x4xf32>
    %c0_65 = arith.constant 0 : index
    %c0_66 = arith.constant 0 : index
    %55 = vector.load %arg7[%c0_65, %c0_66] : memref<1x4xf32, #tpu.memory_space<vmem>>, vector<1x4xf32>
    %56 = vector.broadcast %55 : vector<1x4xf32> to vector<2x4xf32>
    %57 = arith.addf %54, %56 : vector<2x4xf32>
    %cst_67 = arith.constant 0.000000e+00 : f32
    %58 = vector.broadcast %cst_67 : f32 to vector<2x4xf32>
    %59 = arith.maximumf %57, %58 : vector<2x4xf32>
    %c0_68 = arith.constant 0 : index
    %c0_69 = arith.constant 0 : index
    %60 = vector.load %arg8[%c0_68, %c0_69] : memref<4x8xf32, #tpu.memory_space<vmem>>, vector<4x8xf32>
    %cst_70 = arith.constant dense<0.000000e+00> : vector<2x8xf32>
    %61 = tpu.matmul %59, %60, %cst_70 {dimension_numbers = #tpu.dot_dimension_numbers<[1], [0], [0], [1], [0, 0, 1, 1], [], []>} : vector<2x4xf32>, vector<4x8xf32>, vector<2x8xf32> -> vector<2x8xf32>
    %c0_71 = arith.constant 0 : index
    %c0_72 = arith.constant 0 : index
    %62 = vector.load %arg9[%c0_71, %c0_72] : memref<1x8xf32, #tpu.memory_space<vmem>>, vector<1x8xf32>
    %63 = vector.broadcast %62 : vector<1x8xf32> to vector<2x8xf32>
    %64 = arith.addf %61, %63 : vector<2x8xf32>
    %65 = arith.negf %64 : vector<2x8xf32>
    %66 = math.exp %65 : vector<2x8xf32>
    %cst_73 = arith.constant 1.000000e+00 : f32
    %67 = vector.broadcast %cst_73 : f32 to vector<2x8xf32>
    %68 = arith.addf %67, %66 : vector<2x8xf32>
    %69 = arith.divf %67, %68 : vector<2x8xf32>
    %70 = vector.shape_cast %69 : vector<2x8xf32> to vector<2x1x8xf32>
    %71 = vector.shape_cast %70 : vector<2x1x8xf32> to vector<2x1x8xf32>
    %72 = vector.broadcast %71 : vector<2x1x8xf32> to vector<2x16x8xf32>
    %73 = vector.shape_cast %72 : vector<2x16x8xf32> to vector<2x1x128xf32>
    %74 = vector.broadcast %73 : vector<2x1x128xf32> to vector<2x16x128xf32>
    %75 = arith.mulf %49, %74 : vector<2x16x128xf32>
    %76 = arith.addf %75, %0 : vector<2x16x128xf32>
    %c0_74 = arith.constant 0 : index
    %c0_75 = arith.constant 0 : index
    %c0_76 = arith.constant 0 : index
    %77 = vector.load %arg11[%c0_74, %c0_75, %c0_76] : memref<2x16x128xf32, #tpu.memory_space<vmem>>, vector<2x16x128xf32>
    tpu.vector_store %arg11[%c0_74, %c0_75, %c0_76], %76 {strides = array<i32>} : memref<2x16x128xf32, #tpu.memory_space<vmem>>, vector<2x16x128xf32>,
    return
  }
  func.func @transform_0(%arg0: i32) -> (i32, i32, i32) {
    %c0_i32 = arith.constant 0 : i32
    %c0_i32_0 = arith.constant 0 : i32
    %c0_i32_1 = arith.constant 0 : i32
    return %arg0, %c0_i32, %c0_i32_0 : i32, i32, i32
  }
  func.func @transform_1(%arg0: i32) -> (i32, i32, i32) {
    %c0_i32 = arith.constant 0 : i32
    %c0_i32_0 = arith.constant 0 : i32
    %c0_i32_1 = arith.constant 0 : i32
    %c0_i32_2 = arith.constant 0 : i32
    return %c0_i32, %c0_i32_0, %c0_i32_1 : i32, i32, i32
  }
  func.func @transform_2(%arg0: i32) -> (i32, i32) {
    %c0_i32 = arith.constant 0 : i32
    %c0_i32_0 = arith.constant 0 : i32
    %c0_i32_1 = arith.constant 0 : i32
    return %c0_i32, %c0_i32_0 : i32, i32
  }
  func.func @transform_3(%arg0: i32) -> (i32, i32, i32) {
    %c0_i32 = arith.constant 0 : i32
    %c0_i32_0 = arith.constant 0 : i32
    %c0_i32_1 = arith.constant 0 : i32
    %c0_i32_2 = arith.constant 0 : i32
    return %c0_i32, %c0_i32_0, %c0_i32_1 : i32, i32, i32
  }
  func.func @transform_4(%arg0: i32) -> (i32, i32) {
    %c0_i32 = arith.constant 0 : i32
    %c0_i32_0 = arith.constant 0 : i32
    %c0_i32_1 = arith.constant 0 : i32
    return %c0_i32, %c0_i32_0 : i32, i32
  }
  func.func @transform_5(%arg0: i32) -> (i32, i32) {
    %c0_i32 = arith.constant 0 : i32
    %c0_i32_0 = arith.constant 0 : i32
    %c0_i32_1 = arith.constant 0 : i32
    return %c0_i32, %c0_i32_0 : i32, i32
  }
  func.func @transform_6(%arg0: i32) -> (i32, i32) {
    %c0_i32 = arith.constant 0 : i32
    %c0_i32_0 = arith.constant 0 : i32
    %c0_i32_1 = arith.constant 0 : i32
    return %c0_i32, %c0_i32_0 : i32, i32
  }
  func.func @transform_7(%arg0: i32) -> (i32, i32) {
    %c0_i32 = arith.constant 0 : i32
    %c0_i32_0 = arith.constant 0 : i32
    %c0_i32_1 = arith.constant 0 : i32
    return %c0_i32, %c0_i32_0 : i32, i32
  }
  func.func @transform_8(%arg0: i32) -> (i32, i32) {
    %c0_i32 = arith.constant 0 : i32
    %c0_i32_0 = arith.constant 0 : i32
    %c0_i32_1 = arith.constant 0 : i32
    return %c0_i32, %c0_i32_0 : i32, i32
  }
  func.func @transform_9(%arg0: i32) -> (i32, i32) {
    %c0_i32 = arith.constant 0 : i32
    %c0_i32_0 = arith.constant 0 : i32
    %c0_i32_1 = arith.constant 0 : i32
    return %c0_i32, %c0_i32_0 : i32, i32
  }
  func.func @transform_10(%arg0: i32) -> (i32, i32, i32) {
    %c0_i32 = arith.constant 0 : i32
    %c0_i32_0 = arith.constant 0 : i32
    %c0_i32_1 = arith.constant 0 : i32
    return %arg0, %c0_i32, %c0_i32_0 : i32, i32, i32
  }
}

</mosaic_0001>

<llo_original>
// kernel: tpu_custom_call.1
$region0: #{tpu_custom_call.1}
  #allocation0 [shape = 'u32[]', space=smem, size = 0x4, offset = 0x4, fixed_abs, tag = 'smem constant byte address 0x4 - core index']
  #allocation1 [shape = 'u32[72,128]{1,0:T(1,128)}', space=vmem, size = 0x9000, scoped, tag = 'internal scratch']
  #allocation2 [shape = 'f32[2,18,128]{2,1,0:T(8,128)}', space=vmem, size = 0x6000, scoped, tag = 'scratch operand']
  %s0 = inlined_call_operand.vmem [shape: f32[2,16,128], index: 0, kind: input, shape index: {}]
  %s1 = inlined_call_operand.hbm [shape: f32[3,128,128], index: 1, kind: input, shape index: {}]
  %s2 = inlined_call_operand.vmem [shape: f32[1,128], index: 2, kind: input, shape index: {}]
  %s3 = inlined_call_operand.hbm [shape: f32[3,128,128], index: 3, kind: input, shape index: {}]
  %s4 = inlined_call_operand.vmem [shape: f32[1,128], index: 4, kind: input, shape index: {}]
  %s5 = inlined_call_operand.vmem [shape: f32[8,4], index: 5, kind: input, shape index: {}]
  %s6 = inlined_call_operand.vmem [shape: f32[1,4], index: 6, kind: input, shape index: {}]
  %s7 = inlined_call_operand.vmem [shape: f32[4,8], index: 7, kind: input, shape index: {}]
  %s8 = inlined_call_operand.vmem [shape: f32[1,8], index: 8, kind: input, shape index: {}]
  %s9 = inlined_call_operand.vmem [shape: f32[128,8], index: 9, kind: input, shape index: {}]
  %s10 = inlined_call_operand.hbm [shape: f32[2,16,128], index: 10, kind: output, shape index: {}]
  %s11 = sld [smem:[#allocation0]]
  $region58: #{tpu_custom_call.1} parent=0
    _
  %s13 = ssub.s32 1, %s11
  %s14 = scalar_select 0, %s13, %s11
  $region1: #{tpu_custom_call.1} parent=0
    #allocation3 [shape = 'u8[196608]{0}', space=vmem, size = 0x30000, scoped, tag = 'input window, operand 1, single buffered']
    #allocation4 [shape = 's32[1]{0}', space=sflag, size = 0x4, scoped, tag = 'scoped memory for tpu_custom_call.1']
    #allocation5 [shape = 's32[1]{0}', space=sflag, size = 0x4, scoped, tag = 'scoped memory for tpu_custom_call.1']
    #allocation6 [shape = 'u8[196608]{0}', space=vmem, size = 0x30000, scoped, tag = 'input window, operand 3, single buffered']
    #allocation7 [shape = 's32[1]{0}', space=sflag, size = 0x4, scoped, tag = 'scoped memory for tpu_custom_call.1']
    #allocation8 [shape = 'u8[16384]{0}', space=vmem, size = 0x4000, scoped, tag = 'output window, operand 0, single buffered']
    %15 = vsyncpa [#allocation4], 0
    %16 = vsyncpa [#allocation7], 0
    %17 = vsyncpa [#allocation5], 0
    // Predicated region
    $region2: #{tpu_custom_call.1} parent=1 // pred_check
      _
    $region3: #{tpu_custom_call.1} parent=1 // pred_check_branch
      %19 = sbr.rel (0) target = $region5
    $region4: #{tpu_custom_call.1} parent=1 // pred_region
      _
    $region5: #{tpu_custom_call.1} parent=1 // pred_fallthru
      _
    // Predicated region
    $region6: #{tpu_custom_call.1} parent=1 // pred_check
      _
    $region7: #{tpu_custom_call.1} parent=1 // pred_check_branch
      %21 = sbr.rel (0) target = $region9
    $region8: #{tpu_custom_call.1} parent=1 // pred_region
      %23 = vsyncadd [#allocation4], 0
      %s24 = sshll.u32 %s1, 4
      %s25 = int_to_ptr.hbm [resolvable:$true] %s24
      %s26 = sshll.u32 [#allocation3], 4
      %s27 = int_to_ptr.vmem [resolvable:$true] %s26
      %32 = dma.hbm_to_vmem [thread:$0]  %s25, 6144, %s27, [#allocation4], 128, 128, 8
    $region9: #{tpu_custom_call.1} parent=1 // pred_fallthru
      _
    // Predicated region
    $region10: #{tpu_custom_call.1} parent=1 // pred_check
      _
    $region11: #{tpu_custom_call.1} parent=1 // pred_check_branch
      %34 = sbr.rel (0) target = $region13
    $region12: #{tpu_custom_call.1} parent=1 // pred_region
      _
    $region13: #{tpu_custom_call.1} parent=1 // pred_fallthru
      _
    // Predicated region
    $region14: #{tpu_custom_call.1} parent=1 // pred_check
      _
    $region15: #{tpu_custom_call.1} parent=1 // pred_check_branch
      %36 = sbr.rel (0) target = $region17
    $region16: #{tpu_custom_call.1} parent=1 // pred_region
      %38 = vsyncadd [#allocation7], 0
      %s39 = sshll.u32 %s3, 4
      %s40 = int_to_ptr.hbm [resolvable:$true] %s39
      %s41 = sshll.u32 [#allocation6], 4
      %s42 = int_to_ptr.vmem [resolvable:$true] %s41
      %47 = dma.hbm_to_vmem [thread:$0]  %s40, 6144, %s42, [#allocation7], 128, 128, 8
    $region17: #{tpu_custom_call.1} parent=1 // pred_fallthru
      _
    // Predicated region
    $region18: #{tpu_custom_call.1} parent=1 // pred_check
      _
    $region19: #{tpu_custom_call.1} parent=1 // pred_check_branch
      %49 = sbr.rel (0) target = $region21
    $region20: #{tpu_custom_call.1} parent=1 // pred_region
      _
    $region21: #{tpu_custom_call.1} parent=1 // pred_fallthru
      _
    // Predicated region
    $region22: #{tpu_custom_call.1} parent=1 // pred_check
      _
    $region23: #{tpu_custom_call.1} parent=1 // pred_check_branch
      %51 = sbr.rel (0) target = $region25
    $region24: #{tpu_custom_call.1} parent=1 // pred_region
      _
    $region25: #{tpu_custom_call.1} parent=1 // pred_fallthru
      _
    // Predicated region
    $region26: #{tpu_custom_call.1} parent=1 // pred_check
      _
    $region27: #{tpu_custom_call.1} parent=1 // pred_check_branch
      %53 = sbr.rel (0) target = $region29
    $region28: #{tpu_custom_call.1} parent=1 // pred_region
      _
    $region29: #{tpu_custom_call.1} parent=1 // pred_fallthru
      _
    // Predicated region
    $region30: #{tpu_custom_call.1} parent=1 // pred_check
      _
    $region31: #{tpu_custom_call.1} parent=1 // pred_check_branch
      %55 = sbr.rel (0) target = $region33
    $region32: #{tpu_custom_call.1} parent=1 // pred_region
      _
    $region33: #{tpu_custom_call.1} parent=1 // pred_fallthru
      _
    // Predicated region
    $region34: #{tpu_custom_call.1} parent=1 // pred_check
      _
    $region35: #{tpu_custom_call.1} parent=1 // pred_check_branch
      %57 = sbr.rel (0) target = $region37
    $region36: #{tpu_custom_call.1} parent=1 // pred_region
      _
    $region37: #{tpu_custom_call.1} parent=1 // pred_fallthru
      _
    // Predicated region
    $region38: #{tpu_custom_call.1} parent=1 // pred_check
      _
    $region39: #{tpu_custom_call.1} parent=1 // pred_check_branch
      %59 = sbr.rel (0) target = $region41
    $region40: #{tpu_custom_call.1} parent=1 // pred_region
      _
    $region41: #{tpu_custom_call.1} parent=1 // pred_fallthru
      _
    // Predicated region
    $region42: #{tpu_custom_call.1} parent=1 // pred_check
      _
    $region43: #{tpu_custom_call.1} parent=1 // pred_check_branch
      %61 = sbr.rel (0) target = $region45
    $region44: #{tpu_custom_call.1} parent=1 // pred_region
      %63 = dma.done [#allocation4], 6144
    $region45: #{tpu_custom_call.1} parent=1 // pred_fallthru
      _
    // Predicated region
    $region46: #{tpu_custom_call.1} parent=1 // pred_check
      _
    $region47: #{tpu_custom_call.1} parent=1 // pred_check_branch
      %65 = sbr.rel (0) target = $region49
    $region48: #{tpu_custom_call.1} parent=1 // pred_region
      %67 = dma.done [#allocation7], 6144
    $region49: #{tpu_custom_call.1} parent=1 // pred_fallthru
      _
    %v68 = vld [vmem:[%s0] sm:$0xff]
    %v69 = vld [vmem:[%s0 + $0x8] sm:$0xff]
    %v70 = vld [vmem:[%s0 + $0x10] sm:$0xff]
    %v71 = vld [vmem:[%s0 + $0x18] sm:$0xff]
    %72 = vst [vmem:[#allocation2] sm:$0x1] 0.0
    %73 = vst [vmem:[#allocation2 + $0x18] sm:$0x1] 0.0
    %74 = vst [vmem:[#allocation2 + $0x11] sm:$0x1] 0.0
    %75 = vst [vmem:[#allocation2 + $0x29] sm:$0x1] 0.0
    %76 = vst [vmem:[#allocation2 + $0x1] sm:$0xff] %v68
    %77 = vst [vmem:[#allocation2 + $0x9] sm:$0xff] %v69
    %78 = vst [vmem:[#allocation2 + $0x19] sm:$0xff] %v70
    %79 = vst [vmem:[#allocation2 + $0x21] sm:$0xff] %v71
    %v80 = vld [vmem:[#allocation2] sm:$0xff]
    %v81 = vld [vmem:[#allocation2 + $0x8] sm:$0xff]
    %v82 = vld [vmem:[#allocation2 + $0x18] sm:$0xff]
    %v83 = vld [vmem:[#allocation2 + $0x20] sm:$0xff]
    %v84 = vld [vmem:[#allocation3] sm:$0xff]
    %v85 = vld [vmem:[#allocation3 + $0x8] sm:$0xff]
    %v86 = vld [vmem:[#allocation3 + $0x10] sm:$0xff]
    %v87 = vld [vmem:[#allocation3 + $0x18] sm:$0xff]
    %v88 = vld [vmem:[#allocation3 + $0x20] sm:$0xff]
    %v89 = vld [vmem:[#allocation3 + $0x28] sm:$0xff]
    %v90 = vld [vmem:[#allocation3 + $0x30] sm:$0xff]
    %v91 = vld [vmem:[#allocation3 + $0x38] sm:$0xff]
    %v92 = vld [vmem:[#allocation3 + $0x40] sm:$0xff]
    %v93 = vld [vmem:[#allocation3 + $0x48] sm:$0xff]
    %v94 = vld [vmem:[#allocation3 + $0x50] sm:$0xff]
    %v95 = vld [vmem:[#allocation3 + $0x58] sm:$0xff]
    %v96 = vld [vmem:[#allocation3 + $0x60] sm:$0xff]
    %v97 = vld [vmem:[#allocation3 + $0x68] sm:$0xff]
    %v98 = vld [vmem:[#allocation3 + $0x70] sm:$0xff]
    %v99 = vld [vmem:[#allocation3 + $0x78] sm:$0xff]
    %v100 = vld [vmem:[#allocation2 + $0x1] sm:$0xff]
    %v101 = vld [vmem:[#allocation2 + $0x9] sm:$0xff]
    %v102 = vld [vmem:[#allocation2 + $0x19] sm:$0xff]
    %v103 = vld [vmem:[#allocation2 + $0x21] sm:$0xff]
    %s104 = scalar_lea.vmem [#allocation3], 128
    %v105 = vld [vmem:[%s104] sm:$0xff]
    %v106 = vld [vmem:[%s104 + $0x8] sm:$0xff]
    %v107 = vld [vmem:[%s104 + $0x10] sm:$0xff]
    %v108 = vld [vmem:[%s104 + $0x18] sm:$0xff]
    %v109 = vld [vmem:[%s104 + $0x20] sm:$0xff]
    %v110 = vld [vmem:[%s104 + $0x28] sm:$0xff]
    %v111 = vld [vmem:[%s104 + $0x30] sm:$0xff]
    %v112 = vld [vmem:[%s104 + $0x38] sm:$0xff]
    %v113 = vld [vmem:[%s104 + $0x40] sm:$0xff]
    %v114 = vld [vmem:[%s104 + $0x48] sm:$0xff]
    %v115 = vld [vmem:[%s104 + $0x50] sm:$0xff]
    %v116 = vld [vmem:[%s104 + $0x58] sm:$0xff]
    %v117 = vld [vmem:[%s104 + $0x60] sm:$0xff]
    %v118 = vld [vmem:[%s104 + $0x68] sm:$0xff]
    %v119 = vld [vmem:[%s104 + $0x70] sm:$0xff]
    %v120 = vld [vmem:[%s104 + $0x78] sm:$0xff]
    %121 = vmatpush.msra.mxu0 %v120
    %122 = vmatpush.msra.mxu0 %v119
    %123 = vmatpush.msra.mxu0 %v118
    %124 = vmatpush.msra.mxu0 %v117
    %125 = vmatpush.msra.mxu0 %v116
    %126 = vmatpush.msra.mxu0 %v115
    %127 = vmatpush.msra.mxu0 %v114
    %128 = vmatpush.msra.mxu0 %v113
    %129 = vmatpush.msra.mxu0 %v112
    %130 = vmatpush.msra.mxu0 %v111
    %131 = vmatpush.msra.mxu0 %v110
    %132 = vmatpush.msra.mxu0 %v109
    %133 = vmatpush.msra.mxu0 %v108
    %134 = vmatpush.msra.mxu0 %v107
    %135 = vmatpush.msra.mxu0 %v106
    %136 = vmatpush.msra.mxu0 %v105
    %137 = vmatmul.f32.gmra.mxu0 %v100
    %v138 = vpop.f32.mrf.mxu0
    %v139 = vadd.f32 0.0, %v138
    %140 = vmatmul.f32.gmra.mxu0 %v101
    %v141 = vpop.f32.mrf.mxu0
    %v142 = vadd.f32 0.0, %v141
    %143 = vmatmul.f32.gmra.mxu0 %v102
    %v144 = vpop.f32.mrf.mxu0
    %v145 = vadd.f32 0.0, %v144
    %146 = vmatmul.f32.gmra.mxu0 %v103
    %v147 = vpop.f32.mrf.mxu0
    %v148 = vadd.f32 0.0, %v147
    %149 = vdwg.mxu0
    %150 = vmatpush.msra.mxu0 %v99
    %151 = vmatpush.msra.mxu0 %v98
    %152 = vmatpush.msra.mxu0 %v97
    %153 = vmatpush.msra.mxu0 %v96
    %154 = vmatpush.msra.mxu0 %v95
    %155 = vmatpush.msra.mxu0 %v94
    %156 = vmatpush.msra.mxu0 %v93
    %157 = vmatpush.msra.mxu0 %v92
    %158 = vmatpush.msra.mxu0 %v91
    %159 = vmatpush.msra.mxu0 %v90
    %160 = vmatpush.msra.mxu0 %v89
    %161 = vmatpush.msra.mxu0 %v88
    %162 = vmatpush.msra.mxu0 %v87
    %163 = vmatpush.msra.mxu0 %v86
    %164 = vmatpush.msra.mxu0 %v85
    %165 = vmatpush.msra.mxu0 %v84
    %166 = vmatmul.f32.gmra.mxu0 %v80
    %v167 = vpop.f32.mrf.mxu0
    %v168 = vadd.f32 %v139, %v167
    %169 = vmatmul.f32.gmra.mxu0 %v81
    %v170 = vpop.f32.mrf.mxu0
    %v171 = vadd.f32 %v142, %v170
    %172 = vmatmul.f32.gmra.mxu0 %v82
    %v173 = vpop.f32.mrf.mxu0
    %v174 = vadd.f32 %v145, %v173
    %175 = vmatmul.f32.gmra.mxu0 %v83
    %v176 = vpop.f32.mrf.mxu0
    %v177 = vadd.f32 %v148, %v176
    %178 = vdwg.mxu0
    %v179 = vld [vmem:[#allocation2 + $0x2] sm:$0xff]
    %v180 = vld [vmem:[#allocation2 + $0xa] sm:$0xff]
    %v181 = vld [vmem:[#allocation2 + $0x1a] sm:$0xff]
    %v182 = vld [vmem:[#allocation2 + $0x22] sm:$0xff]
    %s183 = scalar_lea.vmem [#allocation3], 256
    %v184 = vld [vmem:[%s183] sm:$0xff]
    %v185 = vld [vmem:[%s183 + $0x8] sm:$0xff]
    %v186 = vld [vmem:[%s183 + $0x10] sm:$0xff]
    %v187 = vld [vmem:[%s183 + $0x18] sm:$0xff]
    %v188 = vld [vmem:[%s183 + $0x20] sm:$0xff]
    %v189 = vld [vmem:[%s183 + $0x28] sm:$0xff]
    %v190 = vld [vmem:[%s183 + $0x30] sm:$0xff]
    %v191 = vld [vmem:[%s183 + $0x38] sm:$0xff]
    %v192 = vld [vmem:[%s183 + $0x40] sm:$0xff]
    %v193 = vld [vmem:[%s183 + $0x48] sm:$0xff]
    %v194 = vld [vmem:[%s183 + $0x50] sm:$0xff]
    %v195 = vld [vmem:[%s183 + $0x58] sm:$0xff]
    %v196 = vld [vmem:[%s183 + $0x60] sm:$0xff]
    %v197 = vld [vmem:[%s183 + $0x68] sm:$0xff]
    %v198 = vld [vmem:[%s183 + $0x70] sm:$0xff]
    %v199 = vld [vmem:[%s183 + $0x78] sm:$0xff]
    %200 = vmatpush.msra.mxu0 %v199
    %201 = vmatpush.msra.mxu0 %v198
    %202 = vmatpush.msra.mxu0 %v197
    %203 = vmatpush.msra.mxu0 %v196
    %204 = vmatpush.msra.mxu0 %v195
    %205 = vmatpush.msra.mxu0 %v194
    %206 = vmatpush.msra.mxu0 %v193
    %207 = vmatpush.msra.mxu0 %v192
    %208 = vmatpush.msra.mxu0 %v191
    %209 = vmatpush.msra.mxu0 %v190
    %210 = vmatpush.msra.mxu0 %v189
    %211 = vmatpush.msra.mxu0 %v188
    %212 = vmatpush.msra.mxu0 %v187
    %213 = vmatpush.msra.mxu0 %v186
    %214 = vmatpush.msra.mxu0 %v185
    %215 = vmatpush.msra.mxu0 %v184
    %216 = vmatmul.f32.gmra.mxu0 %v179
    %v217 = vpop.f32.mrf.mxu0
    %v218 = vadd.f32 0.0, %v217
    %219 = vmatmul.f32.gmra.mxu0 %v180
    %v220 = vpop.f32.mrf.mxu0
    %v221 = vadd.f32 0.0, %v220
    %222 = vmatmul.f32.gmra.mxu0 %v181
    %v223 = vpop.f32.mrf.mxu0
    %v224 = vadd.f32 0.0, %v223
    %225 = vmatmul.f32.gmra.mxu0 %v182
    %v226 = vpop.f32.mrf.mxu0
    %v227 = vadd.f32 0.0, %v226
    %228 = vdwg.mxu0
    %v229 = vadd.f32 %v168, %v218
    %v230 = vadd.f32 %v171, %v221
    %v231 = vadd.f32 %v174, %v224
    %v232 = vadd.f32 %v177, %v227
    %v233 = vld [vmem:[%s2] sm:$0x1]
    %v235 = vperm.slane %v233, 0
    %v237 = vadd.f32 %v229, %v235
    %v238 = vadd.f32 %v230, %v235
    %v239 = vadd.f32 %v231, %v235
    %v240 = vadd.f32 %v232, %v235
    %v241 = vmax.f32 %v237, 0.0
    %v242 = vmax.f32 %v238, 0.0
    %v243 = vmax.f32 %v239, 0.0
    %v244 = vmax.f32 %v240, 0.0
    %245 = vst [vmem:[#allocation2 + $0x1] sm:$0xff] %v241
    %246 = vst [vmem:[#allocation2 + $0x9] sm:$0xff] %v242
    %247 = vst [vmem:[#allocation2 + $0x19] sm:$0xff] %v243
    %248 = vst [vmem:[#allocation2 + $0x21] sm:$0xff] %v244
    %v249 = vld [vmem:[#allocation2] sm:$0xff]
    %v250 = vld [vmem:[#allocation2 + $0x8] sm:$0xff]
    %v251 = vld [vmem:[#allocation2 + $0x18] sm:$0xff]
    %v252 = vld [vmem:[#allocation2 + $0x20] sm:$0xff]
    %v253 = vld [vmem:[#allocation6] sm:$0xff]
    %v254 = vld [vmem:[#allocation6 + $0x8] sm:$0xff]
    %v255 = vld [vmem:[#allocation6 + $0x10] sm:$0xff]
    %v256 = vld [vmem:[#allocation6 + $0x18] sm:$0xff]
    %v257 = vld [vmem:[#allocation6 + $0x20] sm:$0xff]
    %v258 = vld [vmem:[#allocation6 + $0x28] sm:$0xff]
    %v259 = vld [vmem:[#allocation6 + $0x30] sm:$0xff]
    %v260 = vld [vmem:[#allocation6 + $0x38] sm:$0xff]
    %v261 = vld [vmem:[#allocation6 + $0x40] sm:$0xff]
    %v262 = vld [vmem:[#allocation6 + $0x48] sm:$0xff]
    %v263 = vld [vmem:[#allocation6 + $0x50] sm:$0xff]
    %v264 = vld [vmem:[#allocation6 + $0x58] sm:$0xff]
    %v265 = vld [vmem:[#allocation6 + $0x60] sm:$0xff]
    %v266 = vld [vmem:[#allocation6 + $0x68] sm:$0xff]
    %v267 = vld [vmem:[#allocation6 + $0x70] sm:$0xff]
    %v268 = vld [vmem:[#allocation6 + $0x78] sm:$0xff]
    %v269 = vld [vmem:[#allocation2 + $0x1] sm:$0xff]
    %v270 = vld [vmem:[#allocation2 + $0x9] sm:$0xff]
    %v271 = vld [vmem:[#allocation2 + $0x19] sm:$0xff]
    %v272 = vld [vmem:[#allocation2 + $0x21] sm:$0xff]
    %s273 = scalar_lea.vmem [#allocation6], 128
    %v274 = vld [vmem:[%s273] sm:$0xff]
    %v275 = vld [vmem:[%s273 + $0x8] sm:$0xff]
    %v276 = vld [vmem:[%s273 + $0x10] sm:$0xff]
    %v277 = vld [vmem:[%s273 + $0x18] sm:$0xff]
    %v278 = vld [vmem:[%s273 + $0x20] sm:$0xff]
    %v279 = vld [vmem:[%s273 + $0x28] sm:$0xff]
    %v280 = vld [vmem:[%s273 + $0x30] sm:$0xff]
    %v281 = vld [vmem:[%s273 + $0x38] sm:$0xff]
    %v282 = vld [vmem:[%s273 + $0x40] sm:$0xff]
    %v283 = vld [vmem:[%s273 + $0x48] sm:$0xff]
    %v284 = vld [vmem:[%s273 + $0x50] sm:$0xff]
    %v285 = vld [vmem:[%s273 + $0x58] sm:$0xff]
    %v286 = vld [vmem:[%s273 + $0x60] sm:$0xff]
    %v287 = vld [vmem:[%s273 + $0x68] sm:$0xff]
    %v288 = vld [vmem:[%s273 + $0x70] sm:$0xff]
    %v289 = vld [vmem:[%s273 + $0x78] sm:$0xff]
    %290 = vmatpush.msra.mxu0 %v289
    %291 = vmatpush.msra.mxu0 %v288
    %292 = vmatpush.msra.mxu0 %v287
    %293 = vmatpush.msra.mxu0 %v286
    %294 = vmatpush.msra.mxu0 %v285
    %295 = vmatpush.msra.mxu0 %v284
    %296 = vmatpush.msra.mxu0 %v283
    %297 = vmatpush.msra.mxu0 %v282
    %298 = vmatpush.msra.mxu0 %v281
    %299 = vmatpush.msra.mxu0 %v280
    %300 = vmatpush.msra.mxu0 %v279
    %301 = vmatpush.msra.mxu0 %v278
    %302 = vmatpush.msra.mxu0 %v277
    %303 = vmatpush.msra.mxu0 %v276
    %304 = vmatpush.msra.mxu0 %v275
    %305 = vmatpush.msra.mxu0 %v274
    %306 = vmatmul.f32.gmra.mxu0 %v269
    %v307 = vpop.f32.mrf.mxu0
    %v308 = vadd.f32 0.0, %v307
    %309 = vmatmul.f32.gmra.mxu0 %v270
    %v310 = vpop.f32.mrf.mxu0
    %v311 = vadd.f32 0.0, %v310
    %312 = vmatmul.f32.gmra.mxu0 %v271
    %v313 = vpop.f32.mrf.mxu0
    %v314 = vadd.f32 0.0, %v313
    %315 = vmatmul.f32.gmra.mxu0 %v272
    %v316 = vpop.f32.mrf.mxu0
    %v317 = vadd.f32 0.0, %v316
    %318 = vdwg.mxu0
    %319 = vmatpush.msra.mxu0 %v268
    %320 = vmatpush.msra.mxu0 %v267
    %321 = vmatpush.msra.mxu0 %v266
    %322 = vmatpush.msra.mxu0 %v265
    %323 = vmatpush.msra.mxu0 %v264
    %324 = vmatpush.msra.mxu0 %v263
    %325 = vmatpush.msra.mxu0 %v262
    %326 = vmatpush.msra.mxu0 %v261
    %327 = vmatpush.msra.mxu0 %v260
    %328 = vmatpush.msra.mxu0 %v259
    %329 = vmatpush.msra.mxu0 %v258
    %330 = vmatpush.msra.mxu0 %v257
    %331 = vmatpush.msra.mxu0 %v256
    %332 = vmatpush.msra.mxu0 %v255
    %333 = vmatpush.msra.mxu0 %v254
    %334 = vmatpush.msra.mxu0 %v253
    %335 = vmatmul.f32.gmra.mxu0 %v249
    %v336 = vpop.f32.mrf.mxu0
    %v337 = vadd.f32 %v308, %v336
    %338 = vmatmul.f32.gmra.mxu0 %v250
    %v339 = vpop.f32.mrf.mxu0
    %v340 = vadd.f32 %v311, %v339
    %341 = vmatmul.f32.gmra.mxu0 %v251
    %v342 = vpop.f32.mrf.mxu0
    %v343 = vadd.f32 %v314, %v342
    %344 = vmatmul.f32.gmra.mxu0 %v252
    %v345 = vpop.f32.mrf.mxu0
    %v346 = vadd.f32 %v317, %v345
    %347 = vdwg.mxu0
    %v348 = vld [vmem:[#allocation2 + $0x2] sm:$0xff]
    %v349 = vld [vmem:[#allocation2 + $0xa] sm:$0xff]
    %v350 = vld [vmem:[#allocation2 + $0x1a] sm:$0xff]
    %v351 = vld [vmem:[#allocation2 + $0x22] sm:$0xff]
    %s352 = scalar_lea.vmem [#allocation6], 256
    %v353 = vld [vmem:[%s352] sm:$0xff]
    %v354 = vld [vmem:[%s352 + $0x8] sm:$0xff]
    %v355 = vld [vmem:[%s352 + $0x10] sm:$0xff]
    %v356 = vld [vmem:[%s352 + $0x18] sm:$0xff]
    %v357 = vld [vmem:[%s352 + $0x20] sm:$0xff]
    %v358 = vld [vmem:[%s352 + $0x28] sm:$0xff]
    %v359 = vld [vmem:[%s352 + $0x30] sm:$0xff]
    %v360 = vld [vmem:[%s352 + $0x38] sm:$0xff]
    %v361 = vld [vmem:[%s352 + $0x40] sm:$0xff]
    %v362 = vld [vmem:[%s352 + $0x48] sm:$0xff]
    %v363 = vld [vmem:[%s352 + $0x50] sm:$0xff]
    %v364 = vld [vmem:[%s352 + $0x58] sm:$0xff]
    %v365 = vld [vmem:[%s352 + $0x60] sm:$0xff]
    %v366 = vld [vmem:[%s352 + $0x68] sm:$0xff]
    %v367 = vld [vmem:[%s352 + $0x70] sm:$0xff]
    %v368 = vld [vmem:[%s352 + $0x78] sm:$0xff]
    %369 = vmatpush.msra.mxu0 %v368
    %370 = vmatpush.msra.mxu0 %v367
    %371 = vmatpush.msra.mxu0 %v366
    %372 = vmatpush.msra.mxu0 %v365
    %373 = vmatpush.msra.mxu0 %v364
    %374 = vmatpush.msra.mxu0 %v363
    %375 = vmatpush.msra.mxu0 %v362
    %376 = vmatpush.msra.mxu0 %v361
    %377 = vmatpush.msra.mxu0 %v360
    %378 = vmatpush.msra.mxu0 %v359
    %379 = vmatpush.msra.mxu0 %v358
    %380 = vmatpush.msra.mxu0 %v357
    %381 = vmatpush.msra.mxu0 %v356
    %382 = vmatpush.msra.mxu0 %v355
    %383 = vmatpush.msra.mxu0 %v354
    %384 = vmatpush.msra.mxu0 %v353
    %385 = vmatmul.f32.gmra.mxu0 %v348
    %v386 = vpop.f32.mrf.mxu0
    %v387 = vadd.f32 0.0, %v386
    %388 = vmatmul.f32.gmra.mxu0 %v349
    %v389 = vpop.f32.mrf.mxu0
    %v390 = vadd.f32 0.0, %v389
    %391 = vmatmul.f32.gmra.mxu0 %v350
    %v392 = vpop.f32.mrf.mxu0
    %v393 = vadd.f32 0.0, %v392
    %394 = vmatmul.f32.gmra.mxu0 %v351
    %v395 = vpop.f32.mrf.mxu0
    %v396 = vadd.f32 0.0, %v395
    %397 = vdwg.mxu0
    %v398 = vadd.f32 %v337, %v387
    %v399 = vadd.f32 %v340, %v390
    %v400 = vadd.f32 %v343, %v393
    %v401 = vadd.f32 %v346, %v396
    %v402 = vld [vmem:[%s4] sm:$0x1]
    %v404 = vperm.slane %v402, 0
    %v406 = vadd.f32 %v398, %v404
    %v407 = vadd.f32 %v399, %v404
    %v408 = vadd.f32 %v400, %v404
    %v409 = vadd.f32 %v401, %v404
    %v410 = vadd.f32 %v406, %v407
    %v411 = vrot.slane %v410, 4
    %v412 = vadd.f32 %v410, %v411
    %v413 = vrot.slane %v412, 2
    %v414 = vadd.f32 %v412, %v413
    %v415 = vrot.slane %v414, 1
    %v416 = vadd.f32 %v414, %v415
    %v417 = vadd.f32 %v408, %v409
    %v418 = vrot.slane %v417, 4
    %v419 = vadd.f32 %v417, %v418
    %v420 = vrot.slane %v419, 2
    %v421 = vadd.f32 %v419, %v420
    %v422 = vrot.slane %v421, 1
    %v423 = vadd.f32 %v421, %v422
    %v424 = vld [vmem:[%s9] sm:$0xff]
    %v425 = vld [vmem:[%s9 + $0x8] sm:$0xff]
    %v426 = vld [vmem:[%s9 + $0x10] sm:$0xff]
    %v427 = vld [vmem:[%s9 + $0x18] sm:$0xff]
    %v428 = vld [vmem:[%s9 + $0x20] sm:$0xff]
    %v429 = vld [vmem:[%s9 + $0x28] sm:$0xff]
    %v430 = vld [vmem:[%s9 + $0x30] sm:$0xff]
    %v431 = vld [vmem:[%s9 + $0x38] sm:$0xff]
    %v432 = vld [vmem:[%s9 + $0x40] sm:$0xff]
    %v433 = vld [vmem:[%s9 + $0x48] sm:$0xff]
    %v434 = vld [vmem:[%s9 + $0x50] sm:$0xff]
    %v435 = vld [vmem:[%s9 + $0x58] sm:$0xff]
    %v436 = vld [vmem:[%s9 + $0x60] sm:$0xff]
    %v437 = vld [vmem:[%s9 + $0x68] sm:$0xff]
    %v438 = vld [vmem:[%s9 + $0x70] sm:$0xff]
    %v439 = vld [vmem:[%s9 + $0x78] sm:$0xff]
    %vm442 = vcmask 1041409
    %v443 = vsel %vm442, %v423, %v416
    %445 = vmatpush.msra.mxu0 %v439
    %446 = vmatpush.msra.mxu0 %v438
    %447 = vmatpush.msra.mxu0 %v437
    %448 = vmatpush.msra.mxu0 %v436
    %449 = vmatpush.msra.mxu0 %v435
    %450 = vmatpush.msra.mxu0 %v434
    %451 = vmatpush.msra.mxu0 %v433
    %452 = vmatpush.msra.mxu0 %v432
    %453 = vmatpush.msra.mxu0 %v431
    %454 = vmatpush.msra.mxu0 %v430
    %455 = vmatpush.msra.mxu0 %v429
    %456 = vmatpush.msra.mxu0 %v428
    %457 = vmatpush.msra.mxu0 %v427
    %458 = vmatpush.msra.mxu0 %v426
    %459 = vmatpush.msra.mxu0 %v425
    %460 = vmatpush.msra.mxu0 %v424
    %461 = vmatmul.f32.gmra.mxu0 %v443
    %v462 = vpop.f32.mrf.mxu0
    %v463 = vadd.f32 0.0, %v462
    %464 = vdwg.mxu0
    %v465 = vld [vmem:[%s5] sm:$0xff]
    %v466 = vld [vmem:[%s6] sm:$0x1]
    %v468 = vperm.slane %v466, 0
    %vm470 = vcmask 64512
    %v472 = vsel %vm470, %v463, 0
    %474 = vmatpush.msra.mxu0 0.0
    %475 = vmatpush.msra.mxu0 0.0
    %476 = vmatpush.msra.mxu0 0.0
    %477 = vmatpush.msra.mxu0 0.0
    %478 = vmatpush.msra.mxu0 0.0
    %479 = vmatpush.msra.mxu0 0.0
    %480 = vmatpush.msra.mxu0 0.0
    %481 = vmatpush.msra.mxu0 0.0
    %482 = vmatpush.msra.mxu0 0.0
    %483 = vmatpush.msra.mxu0 0.0
    %484 = vmatpush.msra.mxu0 0.0
    %485 = vmatpush.msra.mxu0 0.0
    %486 = vmatpush.msra.mxu0 0.0
    %487 = vmatpush.msra.mxu0 0.0
    %488 = vmatpush.msra.mxu0 0.0
    %489 = vmatpush.msra.mxu0 %v465
    %490 = vmatmul.f32.gmra.mxu0 %v472
    %v491 = vpop.f32.mrf.mxu0
    %v492 = vadd.f32 %v468, %v491
    %493 = vdwg.mxu0
    %v494 = vmax.f32 %v492, 0.0
    %v495 = vld [vmem:[%s7] sm:$0xf]
    %v496 = vld [vmem:[%s8] sm:$0x1]
    %v498 = vperm.slane %v496, 0
    %vm500 = vcmask 31744
    %v502 = vsel %vm500, %v494, 0
    %vm504 = vcmask 1043456
    %v506 = vsel %vm504, %v495, 0
    %508 = vmatpush.msra.mxu0 0.0
    %509 = vmatpush.msra.mxu0 0.0
    %510 = vmatpush.msra.mxu0 0.0
    %511 = vmatpush.msra.mxu0 0.0
    %512 = vmatpush.msra.mxu0 0.0
    %513 = vmatpush.msra.mxu0 0.0
    %514 = vmatpush.msra.mxu0 0.0
    %515 = vmatpush.msra.mxu0 0.0
    %516 = vmatpush.msra.mxu0 0.0
    %517 = vmatpush.msra.mxu0 0.0
    %518 = vmatpush.msra.mxu0 0.0
    %519 = vmatpush.msra.mxu0 0.0
    %520 = vmatpush.msra.mxu0 0.0
    %521 = vmatpush.msra.mxu0 0.0
    %522 = vmatpush.msra.mxu0 0.0
    %523 = vmatpush.msra.mxu0 %v506
    %524 = vmatmul.f32.gmra.mxu0 %v502
    %v525 = vpop.f32.mrf.mxu0
    %v526 = vadd.f32 %v498, %v525
    %527 = vdwg.mxu0
    %v528 = vxor.u32 %v526, 2147483648
    %v529 = vmul.f32 %v528, 1.442695
    %v530 = vpow.pop %v529
    %v531 = vadd.f32 %v530, 1.0
    %v532 = vrcp.pop %v531
    %v533 = vmul.f32 %v531, %v532
    %v534 = vsub.f32 1.0, %v533
    %v535 = vmul.f32 %v532, %v534
    %v536 = vadd.f32 %v532, %v535
    %vm537 = vweird.f32 %v531
    %vm538 = vweird.f32 %v532
    %vm539 = vmor %vm537, %vm538
    %v540 = vsel %vm539, %v532, %v536
    %v541 = vand.u32 2147483647, %v531
    %vm542 = vcmp.eq.f32.partialorder %v541, 8.507059e+37
    %v543 = vand.u32 %v531, 2147483648
    %v544 = vor.u32 1.1754944e-38, %v543
    %v545 = vsel %vm542, %v544, %v540
    %v546 = vmul.f32 1.0, %v545
    %v548 = vrot.slane %v546, 1
    %v549 = vperm.slane %v546, 0
    %v550 = vperm.slane %v548, 0
    %v553 = vrot.slane %v549, 4
    %vm554 = vcmask 1047556
    %v555 = vsel %vm554, 0.0, %v553
    %v557 = vunpack.c.l.s4 1983009808
    %v558 = vunpack.c.0.s8 %v557
    %v559 = vperm.slane %v549, %v558
    %v561 = vunpack.c.l.s4 1983009808
    %v562 = vunpack.c.0.s8 %v561
    %v563 = vperm.slane %v555, %v562
    %v564 = vrot.slane %v559, 4
    %v565 = vsel %vm554, 0.0, %v564
    %v567 = vunpack.c.l.s4 1934713408
    %v568 = vunpack.c.0.s8 %v567
    %v569 = vperm.slane %v559, %v568
    %v571 = vunpack.c.l.s4 1934713408
    %v572 = vunpack.c.0.s8 %v571
    %v573 = vperm.slane %v565, %v572
    %v574 = vrot.slane %v563, 4
    %v575 = vsel %vm554, 0.0, %v574
    %v577 = vunpack.c.l.s4 1934713408
    %v578 = vunpack.c.0.s8 %v577
    %v579 = vperm.slane %v563, %v578
    %v581 = vunpack.c.l.s4 1934713408
    %v582 = vunpack.c.0.s8 %v581
    %v583 = vperm.slane %v575, %v582
    %v584 = vrot.slane %v569, 4
    %v585 = vsel %vm554, 0.0, %v584
    %v586 = vrot.slane %v573, 4
    %v587 = vsel %vm554, 0.0, %v586
    %v588 = vrot.slane %v579, 4
    %v589 = vsel %vm554, 0.0, %v588
    %v590 = vrot.slane %v583, 4
    %v591 = vsel %vm554, 0.0, %v590
    %v592 = vrot.slane %v550, 4
    %v593 = vsel %vm554, 0.0, %v592
    %v595 = vunpack.c.l.s4 1983009808
    %v596 = vunpack.c.0.s8 %v595
    %v597 = vperm.slane %v550, %v596
    %v599 = vunpack.c.l.s4 1983009808
    %v600 = vunpack.c.0.s8 %v599
    %v601 = vperm.slane %v593, %v600
    %v602 = vrot.slane %v597, 4
    %v603 = vsel %vm554, 0.0, %v602
    %v605 = vunpack.c.l.s4 1934713408
    %v606 = vunpack.c.0.s8 %v605
    %v607 = vperm.slane %v597, %v606
    %v609 = vunpack.c.l.s4 1934713408
    %v610 = vunpack.c.0.s8 %v609
    %v611 = vperm.slane %v603, %v610
    %v612 = vrot.slane %v601, 4
    %v613 = vsel %vm554, 0.0, %v612
    %v615 = vunpack.c.l.s4 1934713408
    %v616 = vunpack.c.0.s8 %v615
    %v617 = vperm.slane %v601, %v616
    %v619 = vunpack.c.l.s4 1934713408
    %v620 = vunpack.c.0.s8 %v619
    %v621 = vperm.slane %v613, %v620
    %v622 = vrot.slane %v607, 4
    %v623 = vsel %vm554, 0.0, %v622
    %v624 = vrot.slane %v611, 4
    %v625 = vsel %vm554, 0.0, %v624
    %v626 = vrot.slane %v617, 4
    %v627 = vsel %vm554, 0.0, %v626
    %v628 = vrot.slane %v621, 4
    %v629 = vsel %vm554, 0.0, %v628
    %632 = vrot.lane.b32.xlu0 %v585, 8
    %v633 = vpop.permute.xlu0 %632
    %634 = vrot.lane.b32.xlu0 %v623, 8
    %v635 = vpop.permute.xlu0 %634
    %640 = vrot.lane.b32.xlu0 %v573, 16
    %v641 = vpop.permute.xlu0 %640
    %642 = vrot.lane.b32.xlu0 %v611, 16
    %v643 = vpop.permute.xlu0 %642
    %648 = vrot.lane.b32.xlu0 %v587, 24
    %v649 = vpop.permute.xlu0 %648
    %650 = vrot.lane.b32.xlu0 %v625, 24
    %v651 = vpop.permute.xlu0 %650
    %656 = vrot.lane.b32.xlu0 %v579, 32
    %v657 = vpop.permute.xlu0 %656
    %658 = vrot.lane.b32.xlu0 %v617, 32
    %v659 = vpop.permute.xlu0 %658
    %664 = vrot.lane.b32.xlu0 %v589, 40
    %v665 = vpop.permute.xlu0 %664
    %666 = vrot.lane.b32.xlu0 %v627, 40
    %v667 = vpop.permute.xlu0 %666
    %672 = vrot.lane.b32.xlu0 %v583, 48
    %v673 = vpop.permute.xlu0 %672
    %674 = vrot.lane.b32.xlu0 %v621, 48
    %v675 = vpop.permute.xlu0 %674
    %680 = vrot.lane.b32.xlu0 %v591, 56
    %v681 = vpop.permute.xlu0 %680
    %682 = vrot.lane.b32.xlu0 %v629, 56
    %v683 = vpop.permute.xlu0 %682
    %688 = vrot.lane.b32.xlu0 %v569, 64
    %v689 = vpop.permute.xlu0 %688
    %690 = vrot.lane.b32.xlu0 %v607, 64
    %v691 = vpop.permute.xlu0 %690
    %694 = vrot.lane.b32.xlu0 %v585, 72
    %v695 = vpop.permute.xlu0 %694
    %696 = vrot.lane.b32.xlu0 %v623, 72
    %v697 = vpop.permute.xlu0 %696
    %700 = vrot.lane.b32.xlu0 %v573, 80
    %v701 = vpop.permute.xlu0 %700
    %702 = vrot.lane.b32.xlu0 %v611, 80
    %v703 = vpop.permute.xlu0 %702
    %706 = vrot.lane.b32.xlu0 %v587, 88
    %v707 = vpop.permute.xlu0 %706
    %708 = vrot.lane.b32.xlu0 %v625, 88
    %v709 = vpop.permute.xlu0 %708
    %712 = vrot.lane.b32.xlu0 %v579, 96
    %v713 = vpop.permute.xlu0 %712
    %714 = vrot.lane.b32.xlu0 %v617, 96
    %v715 = vpop.permute.xlu0 %714
    %718 = vrot.lane.b32.xlu0 %v589, 104
    %v719 = vpop.permute.xlu0 %718
    %720 = vrot.lane.b32.xlu0 %v627, 104
    %v721 = vpop.permute.xlu0 %720
    %724 = vrot.lane.b32.xlu0 %v583, 112
    %v725 = vpop.permute.xlu0 %724
    %726 = vrot.lane.b32.xlu0 %v621, 112
    %v727 = vpop.permute.xlu0 %726
    %730 = vrot.lane.b32.xlu0 %v591, 120
    %v731 = vpop.permute.xlu0 %730
    %732 = vrot.lane.b32.xlu0 %v629, 120
    %v733 = vpop.permute.xlu0 %732
    %v736 = vsel %vm470, %v569, %v633
    %v737 = vsel %vm470, %v607, %v635
    %vm738 = vcmask 130048
    %v739 = vsel %vm738, %v736, %v641
    %v740 = vsel %vm738, %v737, %v643
    %vm741 = vcmask 195584
    %v742 = vsel %vm741, %v739, %v649
    %v743 = vsel %vm741, %v740, %v651
    %vm744 = vcmask 261120
    %v745 = vsel %vm744, %v742, %v657
    %v746 = vsel %vm744, %v743, %v659
    %vm747 = vcmask 326656
    %v748 = vsel %vm747, %v745, %v665
    %v749 = vsel %vm747, %v746, %v667
    %vm750 = vcmask 392192
    %v751 = vsel %vm750, %v748, %v673
    %v752 = vsel %vm750, %v749, %v675
    %vm753 = vcmask 457728
    %v754 = vsel %vm753, %v751, %v681
    %v755 = vsel %vm753, %v752, %v683
    %vm756 = vcmask 523264
    %v757 = vsel %vm756, %v754, %v689
    %v758 = vsel %vm756, %v755, %v691
    %vm759 = vcmask 588800
    %v760 = vsel %vm759, %v757, %v695
    %v761 = vsel %vm759, %v758, %v697
    %vm762 = vcmask 654336
    %v763 = vsel %vm762, %v760, %v701
    %v764 = vsel %vm762, %v761, %v703
    %vm765 = vcmask 719872
    %v766 = vsel %vm765, %v763, %v707
    %v767 = vsel %vm765, %v764, %v709
    %vm768 = vcmask 785408
    %v769 = vsel %vm768, %v766, %v713
    %v770 = vsel %vm768, %v767, %v715
    %vm771 = vcmask 850944
    %v772 = vsel %vm771, %v769, %v719
    %v773 = vsel %vm771, %v770, %v721
    %vm774 = vcmask 916480
    %v775 = vsel %vm774, %v772, %v725
    %v776 = vsel %vm774, %v773, %v727
    %vm777 = vcmask 982016
    %v778 = vsel %vm777, %v775, %v731
    %v779 = vsel %vm777, %v776, %v733
    %v780 = vperm.slane %v778, 0
    %v781 = vperm.slane %v779, 0
    %v782 = vmul.f32 %v406, %v780
    %v783 = vmul.f32 %v407, %v780
    %v784 = vmul.f32 %v408, %v781
    %v785 = vmul.f32 %v409, %v781
    %v786 = vadd.f32 %v782, %v68
    %v787 = vadd.f32 %v783, %v69
    %v788 = vadd.f32 %v784, %v70
    %v789 = vadd.f32 %v785, %v71
    %790 = vst [vmem:[#allocation8] sm:$0xff] %v786
    %791 = vst [vmem:[#allocation8 + $0x8] sm:$0xff] %v787
    %792 = vst [vmem:[#allocation8 + $0x10] sm:$0xff] %v788
    %793 = vst [vmem:[#allocation8 + $0x18] sm:$0xff] %v789
    // Predicated region
    $region50: #{tpu_custom_call.1} parent=1 // pred_check
      _
    $region51: #{tpu_custom_call.1} parent=1 // pred_check_branch
      %795 = sbr.rel (0) target = $region53
    $region52: #{tpu_custom_call.1} parent=1 // pred_region
      %797 = vsyncadd [#allocation5], 0
      %s798 = sshll.u32 [#allocation8], 4
      %s799 = int_to_ptr.vmem [resolvable:$true] %s798
      %s800 = sshll.u32 %s10, 4
      %s801 = int_to_ptr.hbm [resolvable:$true] %s800
      %806 = dma.vmem_to_hbm [thread:$0]  %s799, 512, %s801, [#allocation5], 128, 128, 8
    $region53: #{tpu_custom_call.1} parent=1 // pred_fallthru
      _
    // Predicated region
    $region54: #{tpu_custom_call.1} parent=1 // pred_check
      _
    $region55: #{tpu_custom_call.1} parent=1 // pred_check_branch
      %808 = sbr.rel (0) target = $region57
    $region56: #{tpu_custom_call.1} parent=1 // pred_region
      %810 = dma.done [#allocation5], 512
    $region57: #{tpu_custom_call.1} parent=1 // pred_fallthru
      _
    %811 = vsyncpa [#allocation4], 1
    %812 = vsyncpa [#allocation7], 1
    %813 = vsyncpa [#allocation5], 1

</llo_original>
